<compile_context>
chip_gen: v6e
topology: v6e:2x2x1
jax: 0.10.0
libtpu: 0.0.40
codegen_flags: <defaults>
</compile_context>

<pallas_src>
import functools

import jax
import jax.numpy as jnp
from jax.experimental import pallas as pl
from jax.experimental.pallas import tpu as pltpu


def _layernorm_kernel(x_ref, o_ref, *, inv_n, eps):
    x = x_ref[...].astype(jnp.float32)
    # Single pass: sum(x) and sum(x*x); var = E[x^2] - mean^2 (unbiased=False).
    s = jnp.sum(x, axis=-1, keepdims=True)
    ss = jnp.sum(x * x, axis=-1, keepdims=True)
    mean = s * inv_n
    var = jnp.maximum(ss * inv_n - mean * mean, 0.0)
    inv = jax.lax.rsqrt(var + eps)          # EUP slot — effectively free
    o_ref[...] = ((x - mean) * inv).astype(o_ref.dtype)


def _round_up(x, m):
    return ((x + m - 1) // m) * m


def layer_norm(x, eps=1e-05, block_rows=None):
    """LayerNorm over dim=1 of (batch, embed), no learnable weight/bias."""
    batch, embed = x.shape
    itemsize = jnp.dtype(x.dtype).itemsize

    # Lane-dense layout: pad the reduced (embed) axis to a multiple of 128.
    # Zero padding leaves sum(x) and sum(x*x) unchanged; 1/N uses the real N.
    e_pad = max(128, _round_up(embed, 128))

    # Row tile: as big as comfortably fits double-buffered VMEM on every chip
    # (2 arrays x 2 buffers x TB x e_pad x itemsize <= ~24 MiB), capped at
    # 1024 rows, floored to the 8-sublane granularity.
    if block_rows is None:
        budget = 24 * 1024 * 1024
        vmem_rows = budget // (4 * e_pad * itemsize)
        block_rows = min(1024, vmem_rows, _round_up(batch, 8))
    tb = max(8, (block_rows // 8) * 8)
    b_pad = _round_up(batch, tb)

    xp = x
    if (b_pad, e_pad) != (batch, embed):
        xp = jnp.zeros((b_pad, e_pad), x.dtype).at[:batch, :embed].set(x)

    inv_n = 1.0 / float(embed)

    out = pl.pallas_call(
        functools.partial(_layernorm_kernel, inv_n=inv_n, eps=eps),
        out_shape=jax.ShapeDtypeStruct((b_pad, e_pad), x.dtype),
        grid=(b_pad // tb,),
        in_specs=[pl.BlockSpec((tb, e_pad), lambda i: (i, 0))],
        out_specs=pl.BlockSpec((tb, e_pad), lambda i: (i, 0)),
        compiler_params=pltpu.CompilerParams(
            dimension_semantics=("parallel",)),
    )(xp)

    if (b_pad, e_pad) != (batch, embed):
        out = out[:batch, :embed]
    return out


if __name__ == "__main__":
    batch_size = 19
    embed_size = 5

    key = jax.random.PRNGKey(0)
    x = jax.random.normal(key, (batch_size, embed_size), dtype=jnp.float32)

    out = jax.block_until_ready(layer_norm(x, eps=1e-05))

    # Reference check in plain JAX (mirrors the PyTorch forward exactly).
    mean = jnp.mean(x, axis=1, keepdims=True)
    var = jnp.mean((x - mean) ** 2, axis=1, keepdims=True)
    ref = (x - mean) / jnp.sqrt(var + 1e-05)
    assert out.shape == (batch_size, embed_size)
    assert jnp.allclose(out, ref, atol=1e-5, rtol=1e-5)

    print("KERNEL_OK")
</pallas_src>

<mosaic_0001>
module attributes {stable_mosaic.version = 11 : i64} {
  func.func @_layernorm_kernel(%arg0: i32, %arg1: memref<24x128xf32, #tpu.memory_space<vmem>>, %arg2: memref<24x128xf32, #tpu.memory_space<vmem>>) attributes {dimension_semantics = [#tpu.dimension_semantics<parallel>], iteration_bounds = array<i64: 1>, scalar_prefetch = 0 : i64, scratch_operands = 0 : i64, tpu.core_type = #tpu.core_type<tc>, window_params = [{transform_indices = @transform_0, window_bounds = array<i64: 24, 128>}, {transform_indices = @transform_1, window_bounds = array<i64: 24, 128>}]} {
    %c0 = arith.constant 0 : index
    %c0_0 = arith.constant 0 : index
    %0 = vector.load %arg1[%c0, %c0_0] : memref<24x128xf32, #tpu.memory_space<vmem>>, vector<24x128xf32>
    %cst = arith.constant dense<0.000000e+00> : vector<24xf32>
    %1 = vector.multi_reduction <add>, %0, %cst [1] : vector<24x128xf32> to vector<24xf32>
    %2 = vector.shape_cast %1 : vector<24xf32> to vector<24x1xf32>
    %3 = arith.mulf %0, %0 : vector<24x128xf32>
    %cst_1 = arith.constant dense<0.000000e+00> : vector<24xf32>
    %4 = vector.multi_reduction <add>, %3, %cst_1 [1] : vector<24x128xf32> to vector<24xf32>
    %5 = vector.shape_cast %4 : vector<24xf32> to vector<24x1xf32>
    %cst_2 = arith.constant 2.000000e-01 : f32
    %6 = vector.broadcast %cst_2 : f32 to vector<24x1xf32>
    %7 = arith.mulf %2, %6 : vector<24x1xf32>
    %cst_3 = arith.constant 2.000000e-01 : f32
    %8 = vector.broadcast %cst_3 : f32 to vector<24x1xf32>
    %9 = arith.mulf %5, %8 : vector<24x1xf32>
    %10 = arith.mulf %7, %7 : vector<24x1xf32>
    %11 = arith.subf %9, %10 : vector<24x1xf32>
    %cst_4 = arith.constant 0.000000e+00 : f32
    %12 = vector.broadcast %cst_4 : f32 to vector<24x1xf32>
    %13 = arith.maximumf %11, %12 : vector<24x1xf32>
    %cst_5 = arith.constant 9.99999974E-6 : f32
    %14 = vector.broadcast %cst_5 : f32 to vector<24x1xf32>
    %15 = arith.addf %13, %14 : vector<24x1xf32>
    %16 = math.rsqrt %15 : vector<24x1xf32>
    %17 = vector.broadcast %7 : vector<24x1xf32> to vector<24x128xf32>
    %18 = arith.subf %0, %17 : vector<24x128xf32>
    %19 = vector.broadcast %16 : vector<24x1xf32> to vector<24x128xf32>
    %20 = arith.mulf %18, %19 : vector<24x128xf32>
    %c0_6 = arith.constant 0 : index
    %c0_7 = arith.constant 0 : index
    %21 = vector.load %arg2[%c0_6, %c0_7] : memref<24x128xf32, #tpu.memory_space<vmem>>, vector<24x128xf32>
    tpu.vector_store %arg2[%c0_6, %c0_7], %20 {strides = array<i32>} : memref<24x128xf32, #tpu.memory_space<vmem>>, vector<24x128xf32>,
    return
  }
  func.func @transform_0(%arg0: i32) -> (i32, i32) {
    %c0_i32 = arith.constant 0 : i32
    %c0_i32_0 = arith.constant 0 : i32
    return %arg0, %c0_i32 : i32, i32
  }
  func.func @transform_1(%arg0: i32) -> (i32, i32) {
    %c0_i32 = arith.constant 0 : i32
    %c0_i32_0 = arith.constant 0 : i32
    return %arg0, %c0_i32 : i32, i32
  }
}

</mosaic_0001>

<llo_original>
// kernel: tpu_custom_call.1
$region0: #{tpu_custom_call.1}
  #allocation0 [shape = 'u32[]', space=smem, size = 0x4, offset = 0x4, fixed_abs, tag = 'smem constant byte address 0x4 - core index']
  #allocation1 [shape = 'u32[144,128]{1,0:T(1,128)}', space=vmem, size = 0x12000, scoped, tag = 'internal scratch']
  %s0 = inlined_call_operand.hbm [shape: f32[24,128], index: 0, kind: input, shape index: {}]
  %s1 = inlined_call_operand.hbm [shape: f32[24,128], index: 1, kind: output, shape index: {}]
  %s2 = sld [smem:[#allocation0]]
  $region18: #{tpu_custom_call.1} parent=0
    _
  %s4 = ssub.s32 1, %s2
  %s5 = scalar_select 0, %s4, %s2
  $region1: #{tpu_custom_call.1} parent=0
    #allocation2 [shape = 'u8[12288]{0}', space=vmem, size = 0x3000, scoped, tag = 'input window, operand 0, single buffered']
    #allocation3 [shape = 's32[1]{0}', space=sflag, size = 0x4, scoped, tag = 'scoped memory for tpu_custom_call.1']
    #allocation4 [shape = 's32[1]{0}', space=sflag, size = 0x4, scoped, tag = 'scoped memory for tpu_custom_call.1']
    #allocation5 [shape = 'u8[12288]{0}', space=vmem, size = 0x3000, scoped, tag = 'output window, operand 0, single buffered']
    %6 = vsyncpa [#allocation3], 0
    %7 = vsyncpa [#allocation4], 0
    // Predicated region
    $region2: #{tpu_custom_call.1} parent=1 // pred_check
      _
    $region3: #{tpu_custom_call.1} parent=1 // pred_check_branch
      %9 = sbr.rel (0) target = $region5
    $region4: #{tpu_custom_call.1} parent=1 // pred_region
      %s11 = ssub.s32 384, 384
      %12 = vsyncadd [#allocation3], %s11
      %s13 = sshll.u32 [#allocation2], 4
      %s14 = int_to_ptr.vmem [resolvable:$true] %s13
      %19 = dma.hbm_to_vmem [thread:$0]  %s0, 384, %s14, [#allocation3], 128, 128, 8
    $region5: #{tpu_custom_call.1} parent=1 // pred_fallthru
      _
    // Predicated region
    $region6: #{tpu_custom_call.1} parent=1 // pred_check
      _
    $region7: #{tpu_custom_call.1} parent=1 // pred_check_branch
      %21 = sbr.rel (0) target = $region9
    $region8: #{tpu_custom_call.1} parent=1 // pred_region
      %22 = dma.done [#allocation3], 384
    $region9: #{tpu_custom_call.1} parent=1 // pred_fallthru
      _
    %v23 = vld [vmem:[#allocation2] sm:$0xff]
    %v24 = vld [vmem:[#allocation2 + $0x8] sm:$0xff]
    %v25 = vld [vmem:[#allocation2 + $0x10] sm:$0xff]
    %26 = vadd.xlane.f32.xlu0 %v23
    %v27 = vpop.xlane.xlu0 %26
    %28 = vadd.xlane.f32.xlu0 %v24
    %v29 = vpop.xlane.xlu0 %28
    %30 = vadd.xlane.f32.xlu0 %v25
    %v31 = vpop.xlane.xlu0 %30
    %v32 = vmul.f32 %v23, %v23
    %v33 = vmul.f32 %v24, %v24
    %v34 = vmul.f32 %v25, %v25
    %35 = vadd.xlane.f32.xlu0 %v32
    %v36 = vpop.xlane.xlu0 %35
    %37 = vadd.xlane.f32.xlu0 %v33
    %v38 = vpop.xlane.xlu0 %37
    %39 = vadd.xlane.f32.xlu0 %v34
    %v40 = vpop.xlane.xlu0 %39
    %v41 = vmul.f32 %v27, 0.2
    %v42 = vmul.f32 %v29, 0.2
    %v43 = vmul.f32 %v31, 0.2
    %v44 = vmul.f32 %v36, 0.2
    %v45 = vmul.f32 %v38, 0.2
    %v46 = vmul.f32 %v40, 0.2
    %v47 = vmul.f32 %v41, %v41
    %v48 = vmul.f32 %v42, %v42
    %v49 = vmul.f32 %v43, %v43
    %v50 = vsub.f32 %v44, %v47
    %v51 = vsub.f32 %v45, %v48
    %v52 = vsub.f32 %v46, %v49
    %v53 = vmax.f32 %v50, 0.0
    %v54 = vmax.f32 %v51, 0.0
    %v55 = vmax.f32 %v52, 0.0
    %v56 = vadd.f32 %v53, 1e-05
    %v57 = vadd.f32 %v54, 1e-05
    %v58 = vadd.f32 %v55, 1e-05
    %v59 = vrsqrt.pop %v56
    %v60 = vrsqrt.pop %v57
    %v61 = vrsqrt.pop %v58
    %v62 = vsub.f32 %v23, %v41
    %v63 = vsub.f32 %v24, %v42
    %v64 = vsub.f32 %v25, %v43
    %v65 = vmul.f32 %v62, %v59
    %v66 = vmul.f32 %v63, %v60
    %v67 = vmul.f32 %v64, %v61
    %68 = vst [vmem:[#allocation5] sm:$0xff] %v65
    %69 = vst [vmem:[#allocation5 + $0x8] sm:$0xff] %v66
    %70 = vst [vmem:[#allocation5 + $0x10] sm:$0xff] %v67
    // Predicated region
    $region10: #{tpu_custom_call.1} parent=1 // pred_check
      _
    $region11: #{tpu_custom_call.1} parent=1 // pred_check_branch
      %72 = sbr.rel (0) target = $region13
    $region12: #{tpu_custom_call.1} parent=1 // pred_region
      %s74 = ssub.s32 384, 384
      %75 = vsyncadd [#allocation4], %s74
      %s76 = sshll.u32 [#allocation5], 4
      %s77 = int_to_ptr.vmem [resolvable:$true] %s76
      %82 = dma.vmem_to_hbm [thread:$0]  %s77, 384, %s1, [#allocation4], 128, 128, 8
    $region13: #{tpu_custom_call.1} parent=1 // pred_fallthru
      _
    // Predicated region
    $region14: #{tpu_custom_call.1} parent=1 // pred_check
      _
    $region15: #{tpu_custom_call.1} parent=1 // pred_check_branch
      %84 = sbr.rel (0) target = $region17
    $region16: #{tpu_custom_call.1} parent=1 // pred_region
      %85 = dma.done [#allocation4], 384
    $region17: #{tpu_custom_call.1} parent=1 // pred_fallthru
      _
    %86 = vsyncpa [#allocation3], 1
    %87 = vsyncpa [#allocation4], 1

</llo_original>
